<compile_context>
chip_gen: v7x
topology: tpu7x:2x2x1
jax: 0.10.0
libtpu: 0.0.40
codegen_flags: <defaults>
</compile_context>

<pallas_src>
import jax
import jax.numpy as jnp
from jax.experimental import pallas as pl
from jax.experimental.pallas import tpu as pltpu

# Module hyper-parameters (query_dim % num_heads == 0 -> pad_dim == 0)
NODE_DIM = 24
EDGE_DIM = 16
TIME_DIM = 8
NUM_HEADS = 2
QUERY_DIM = NODE_DIM + TIME_DIM            # 32
KEY_DIM = NODE_DIM + EDGE_DIM + TIME_DIM   # 48
HEAD_DIM = QUERY_DIM // NUM_HEADS          # 16
SCALE = HEAD_DIM ** (-0.5)
LN_EPS = 1e-5


def mha_kernel(q_in_ref, nbr_node_ref, nbr_edge_ref, nbr_time_ref, mask_ref,
               wq_ref, w_kv_ref, wr_ref, br_ref, ln_g_ref, ln_b_ref,
               out_ref):
    # q_in  : (TB, 32) f32         nbr_* : (TB*N, D) bf16      mask : (TB, N) f32
    # wq    : (32, 32) bf16        w_kv  : (48, 64) bf16       wr   : (32, 32) bf16
    # br / ln_g / ln_b : (1, 32) f32          out : (TB, 32 + H*N) f32
    TB = q_in_ref.shape[0]
    N = mask_ref.shape[1]
    f32 = jnp.float32
    bf16 = jnp.bfloat16

    q_in = q_in_ref[...]                                   # (TB, 32) f32 residual
    mask_bad = mask_ref[...] == 0.0                        # (TB, N)

    # ---- Q projection (tiny): bf16 operands, f32 accumulate ----
    q = jnp.dot(q_in.astype(bf16), wq_ref[...], preferred_element_type=f32)  # (TB, 32)

    # ---- single fused K||V projection over the TB*N neighbor rows ----
    # Concat the three streams along lanes in VMEM (no HBM concat round trip);
    # concat runs in f32 (proven lowering), then cast to bf16 for the one MXU pass.
    kv_in = jnp.concatenate(
        [nbr_node_ref[...].astype(f32),
         nbr_edge_ref[...].astype(f32),
         nbr_time_ref[...].astype(f32)], axis=-1).astype(bf16)     # (TB*N, 48)
    kv = jnp.dot(kv_in, w_kv_ref[...], preferred_element_type=f32)  # (TB*N, 64) f32
    k3 = kv[:, :QUERY_DIM].reshape(TB, N, QUERY_DIM)
    v3 = kv[:, QUERY_DIM:].reshape(TB, N, QUERY_DIM)

    # ---- scaled masked attention: depth-16 contractions stay on the VPU/XLU ----
    neg_big = f32(-1e10)
    y_heads = []
    p_heads = []
    for h in range(NUM_HEADS):                     # static unroll over heads
        lo = h * HEAD_DIM
        hi = lo + HEAD_DIM
        s = jnp.sum(q[:, None, lo:hi] * k3[..., lo:hi], axis=-1) * SCALE   # (TB, N)
        s = jnp.where(mask_bad, neg_big, s)
        s = s - jnp.max(s, axis=-1, keepdims=True)
        e = jnp.exp(s)
        denom = jnp.sum(e, axis=-1, keepdims=True)
        p = e * pl.reciprocal(denom, approx=True)                          # EUP slot
        p_heads.append(p)
        # attention @ V for this head (implicit broadcast, no materialized temp)
        y_heads.append(jnp.sum(p[:, :, None] * v3[..., lo:hi], axis=1))    # (TB, 16)

    attn_out = jnp.concatenate(y_heads, axis=-1)                           # (TB, 32)

    # ---- residual_fc + residual add + LayerNorm (dropout == identity, eval) ----
    proj = jnp.dot(attn_out.astype(bf16), wr_ref[...],
                   preferred_element_type=f32) + br_ref[...]
    x = proj + q_in
    mean = jnp.mean(x, axis=-1, keepdims=True)
    var = jnp.mean(jnp.square(x - mean), axis=-1, keepdims=True)
    y = (x - mean) * jax.lax.rsqrt(var + LN_EPS)
    y = y * ln_g_ref[...] + ln_b_ref[...]                                  # (TB, 32)

    # merged output slab: [LayerNorm output | head-0 probs | head-1 probs]
    out_ref[...] = jnp.concatenate([y] + p_heads, axis=-1)                 # (TB, 32+H*N)


def _round_up(x, m):
    return ((x + m - 1) // m) * m


def multi_head_attention(node_features, node_time_features,
                         neighbor_node_features, neighbor_node_time_features,
                         neighbor_node_edge_features, neighbor_masks, params,
                         block_rows=1024):
    B = node_features.shape[0]
    N = neighbor_node_features.shape[1]
    OUT_COLS = QUERY_DIM + NUM_HEADS * N
    f32 = jnp.float32
    bf16 = jnp.bfloat16

    # Batch tile: large to amortize the ~0.35us per-step pipeline overhead, a
    # multiple of 16 so the bf16 neighbor blocks satisfy sublane tiling, and
    # clamped so the grid keeps >= 2 steps (v7x has 2 TensorCores that split
    # the 'parallel' batch axis).  Tiny batches fall back to a single full
    # block (the "equals full dim" escape of the (8,128) rule).
    if B <= 16:
        TB = B
    else:
        TB = min(block_rows, _round_up(pl.cdiv(B, 2), 16))
    grid = (pl.cdiv(B, TB),)

    # query input (also the residual): tiny (B, 32) concat, kept f32.
    q_in = jnp.concatenate(
        [node_features, node_time_features[:, 0, :]], axis=-1).astype(f32)

    # Neighbor streams stay separate in HBM (no (B, N, 48) concat round trip)
    # and are stored bf16 to halve the dominant HBM stream; the (B, N, D) ->
    # (B*N, D) flatten is a free reshape.
    nbr_node = neighbor_node_features.reshape(B * N, NODE_DIM).astype(bf16)
    nbr_edge = neighbor_node_edge_features.reshape(B * N, EDGE_DIM).astype(bf16)
    nbr_time = neighbor_node_time_features.reshape(B * N, TIME_DIM).astype(bf16)
    mask = jnp.asarray(neighbor_masks).astype(f32)                    # (B, N)

    # Weights pre-transposed to (in, out); Wk and Wv fused along the output dim
    # so the K/V projection is ONE MXU pass.  Matmul weights in bf16.
    wq_t = params['wq'].T.astype(bf16)                                # (32, 32)
    w_kv = jnp.concatenate([params['wk'].T, params['wv'].T],
                           axis=1).astype(bf16)                       # (48, 64)
    wr_t = params['wr'].T.astype(bf16)                                # (32, 32)
    br = params['br'][None, :].astype(f32)
    ln_g = params['ln_g'][None, :].astype(f32)
    ln_b = params['ln_b'][None, :].astype(f32)

    row_map = lambda b: (b, 0)
    const_map = lambda b: (0, 0)

    in_specs = [
        pl.BlockSpec((TB, QUERY_DIM), row_map),            # q_in (f32)
        pl.BlockSpec((TB * N, NODE_DIM), row_map),         # neighbor node feats (bf16)
        pl.BlockSpec((TB * N, EDGE_DIM), row_map),         # neighbor edge feats (bf16)
        pl.BlockSpec((TB * N, TIME_DIM), row_map),         # neighbor time feats (bf16)
        pl.BlockSpec((TB, N), row_map),                    # mask (f32)
        pl.BlockSpec((QUERY_DIM, QUERY_DIM), const_map),   # wq
        pl.BlockSpec((KEY_DIM, 2 * QUERY_DIM), const_map), # fused Wk||Wv
        pl.BlockSpec((QUERY_DIM, QUERY_DIM), const_map),   # wr
        pl.BlockSpec((1, QUERY_DIM), const_map),           # br
        pl.BlockSpec((1, QUERY_DIM), const_map),           # ln_g
        pl.BlockSpec((1, QUERY_DIM), const_map),           # ln_b
    ]
    out_specs = pl.BlockSpec((TB, OUT_COLS), row_map)

    flops = (2 * B * N * KEY_DIM * 2 * QUERY_DIM           # fused K||V projection
             + 2 * B * QUERY_DIM * QUERY_DIM * 2           # Q projection + residual_fc
             + 2 * B * NUM_HEADS * N * HEAD_DIM * 2)       # scores + attention @ V
    bytes_accessed = (4 * B * QUERY_DIM + 2 * B * N * KEY_DIM + 4 * B * N
                      + 4 * B * OUT_COLS
                      + 2 * KEY_DIM * 2 * QUERY_DIM + 2 * 2 * QUERY_DIM * QUERY_DIM)
    cost = pl.CostEstimate(
        flops=flops,
        transcendentals=B * (NUM_HEADS * N + NUM_HEADS + 1),
        bytes_accessed=bytes_accessed)

    slab = pl.pallas_call(
        mha_kernel,
        out_shape=jax.ShapeDtypeStruct((B, OUT_COLS), jnp.float32),
        grid_spec=pltpu.PrefetchScalarGridSpec(
            num_scalar_prefetch=0,
            grid=grid,
            in_specs=in_specs,
            out_specs=out_specs,
        ),
        compiler_params=pltpu.CompilerParams(
            dimension_semantics=("parallel",),
            vmem_limit_bytes=32 * 1024 * 1024),
        cost_estimate=cost,
    )(q_in, nbr_node, nbr_edge, nbr_time, mask,
      wq_t, w_kv, wr_t, br, ln_g, ln_b)

    out = slab[:, :QUERY_DIM]
    scores = slab[:, QUERY_DIM:].reshape(B, NUM_HEADS, N)
    return out, scores


def mha_reference(node_features, node_time_features,
                  neighbor_node_features, neighbor_node_time_features,
                  neighbor_node_edge_features, neighbor_masks, params):
    """Pure-JAX (f32) mirror of the PyTorch forward (eval mode)."""
    B = node_features.shape[0]
    N = neighbor_node_features.shape[1]
    q_in = jnp.concatenate([node_features[:, None, :], node_time_features], axis=2)
    kv_in = jnp.concatenate([neighbor_node_features, neighbor_node_edge_features,
                             neighbor_node_time_features], axis=2)
    q = q_in @ params['wq'].T                 # (B, 1, QD)
    k = kv_in @ params['wk'].T                # (B, N, QD)
    v = kv_in @ params['wv'].T
    qh = q.reshape(B, 1, NUM_HEADS, HEAD_DIM).transpose(0, 2, 1, 3)
    kh = k.reshape(B, N, NUM_HEADS, HEAD_DIM).transpose(0, 2, 1, 3)
    vh = v.reshape(B, N, NUM_HEADS, HEAD_DIM).transpose(0, 2, 1, 3)
    att = jnp.einsum('bhld,bhnd->bhln', qh, kh) * SCALE
    att = jnp.where((neighbor_masks == 0)[:, None, None, :], -1e10, att)
    p = jax.nn.softmax(att, axis=-1)
    ao = jnp.einsum('bhln,bhnd->bhld', p, vh)
    ao = ao.transpose(0, 2, 1, 3).reshape(B, 1, NUM_HEADS * HEAD_DIM)
    out = ao @ params['wr'].T + params['br']
    x = out + q_in
    mean = x.mean(-1, keepdims=True)
    var = jnp.square(x - mean).mean(-1, keepdims=True)
    y = (x - mean) / jnp.sqrt(var + LN_EPS) * params['ln_g'] + params['ln_b']
    return y[:, 0, :], p[:, :, 0, :]


if __name__ == "__main__":
    master_key = jax.random.PRNGKey(0)

    def run_case(B, N, case_key):
        keys = jax.random.split(case_key, 11)
        node_features = jax.random.normal(keys[0], (B, NODE_DIM), jnp.float32)
        node_time_features = jax.random.normal(keys[1], (B, 1, TIME_DIM), jnp.float32)
        neighbor_node_features = jax.random.normal(keys[2], (B, N, NODE_DIM), jnp.float32)
        neighbor_node_time_features = jax.random.normal(keys[3], (B, N, TIME_DIM), jnp.float32)
        neighbor_node_edge_features = jax.random.normal(keys[4], (B, N, EDGE_DIM), jnp.float32)
        # 0/1 neighbor mask; guarantee at least one valid neighbor per row
        neighbor_masks = (jax.random.uniform(keys[5], (B, N)) > 0.3).astype(jnp.float32)
        neighbor_masks = neighbor_masks.at[:, 0].set(1.0)

        # deterministic parameter init (Linear weights are (out, in) like PyTorch)
        params = {
            'wq': 0.1 * jax.random.normal(keys[6], (QUERY_DIM, QUERY_DIM), jnp.float32),
            'wk': 0.1 * jax.random.normal(keys[7], (QUERY_DIM, KEY_DIM), jnp.float32),
            'wv': 0.1 * jax.random.normal(keys[8], (QUERY_DIM, KEY_DIM), jnp.float32),
            'wr': 0.1 * jax.random.normal(keys[9], (QUERY_DIM, QUERY_DIM), jnp.float32),
            'br': 0.1 * jax.random.normal(keys[10], (QUERY_DIM,), jnp.float32),
            'ln_g': jnp.ones((QUERY_DIM,), jnp.float32),
            'ln_b': jnp.zeros((QUERY_DIM,), jnp.float32),
        }

        out, scores = multi_head_attention(
            node_features, node_time_features, neighbor_node_features,
            neighbor_node_time_features, neighbor_node_edge_features,
            neighbor_masks, params)
        jax.block_until_ready((out, scores))

        ref_out, ref_scores = mha_reference(
            node_features, node_time_features, neighbor_node_features,
            neighbor_node_time_features, neighbor_node_edge_features,
            neighbor_masks, params)

        assert out.shape == (B, QUERY_DIM)
        assert scores.shape == (B, NUM_HEADS, N)
        # Tolerance reflects bf16 matmul operands (f32 accumulation) and the
        # EUP approximate-reciprocal softmax denominator; reference is pure f32.
        assert jnp.allclose(out, ref_out, atol=3e-2, rtol=3e-2), \
            float(jnp.max(jnp.abs(out - ref_out)))
        assert jnp.allclose(scores, ref_scores, atol=3e-2, rtol=3e-2), \
            float(jnp.max(jnp.abs(scores - ref_scores)))

    k1, k2 = jax.random.split(master_key)
    run_case(4, 8, k1)    # single full-batch block (B <= 16 path)
    run_case(20, 8, k2)   # 2 grid steps, ragged last block (B % TB != 0)
    print("KERNEL_OK")
</pallas_src>

<mosaic_0001>
module attributes {stable_mosaic.version = 11 : i64} {
  func.func @mha_kernel(%arg0: i32, %arg1: memref<4x32xf32, #tpu.memory_space<vmem>>, %arg2: memref<32x24xbf16, #tpu.memory_space<vmem>>, %arg3: memref<32x16xbf16, #tpu.memory_space<vmem>>, %arg4: memref<32x8xbf16, #tpu.memory_space<vmem>>, %arg5: memref<4x8xf32, #tpu.memory_space<vmem>>, %arg6: memref<32x32xbf16, #tpu.memory_space<vmem>>, %arg7: memref<48x64xbf16, #tpu.memory_space<vmem>>, %arg8: memref<32x32xbf16, #tpu.memory_space<vmem>>, %arg9: memref<1x32xf32, #tpu.memory_space<vmem>>, %arg10: memref<1x32xf32, #tpu.memory_space<vmem>>, %arg11: memref<1x32xf32, #tpu.memory_space<vmem>>, %arg12: memref<4x48xf32, #tpu.memory_space<vmem>>) attributes {dimension_semantics = [#tpu.dimension_semantics<parallel>], iteration_bounds = array<i64: 1>, scalar_prefetch = 0 : i64, scratch_operands = 0 : i64, tpu.core_type = #tpu.core_type<tc>, window_params = [{transform_indices = @transform_0, window_bounds = array<i64: 4, 32>}, {transform_indices = @transform_1, window_bounds = array<i64: 32, 24>}, {transform_indices = @transform_2, window_bounds = array<i64: 32, 16>}, {transform_indices = @transform_3, window_bounds = array<i64: 32, 8>}, {transform_indices = @transform_4, window_bounds = array<i64: 4, 8>}, {pipeline_mode = #tpu.pipeline_mode<synchronous>, transform_indices = @transform_5, window_bounds = array<i64: 32, 32>}, {pipeline_mode = #tpu.pipeline_mode<synchronous>, transform_indices = @transform_6, window_bounds = array<i64: 48, 64>}, {pipeline_mode = #tpu.pipeline_mode<synchronous>, transform_indices = @transform_7, window_bounds = array<i64: 32, 32>}, {pipeline_mode = #tpu.pipeline_mode<synchronous>, transform_indices = @transform_8, window_bounds = array<i64: 1, 32>}, {pipeline_mode = #tpu.pipeline_mode<synchronous>, transform_indices = @transform_9, window_bounds = array<i64: 1, 32>}, {pipeline_mode = #tpu.pipeline_mode<synchronous>, transform_indices = @transform_10, window_bounds = array<i64: 1, 32>}, {transform_indices = @transform_11, window_bounds = array<i64: 4, 48>}]} {
    %c0 = arith.constant 0 : index
    %c0_0 = arith.constant 0 : index
    %0 = vector.load %arg1[%c0, %c0_0] : memref<4x32xf32, #tpu.memory_space<vmem>>, vector<4x32xf32>
    %c0_1 = arith.constant 0 : index
    %c0_2 = arith.constant 0 : index
    %1 = vector.load %arg5[%c0_1, %c0_2] : memref<4x8xf32, #tpu.memory_space<vmem>>, vector<4x8xf32>
    %cst = arith.constant 0.000000e+00 : f32
    %2 = vector.broadcast %cst : f32 to vector<4x8xf32>
    %3 = arith.cmpf oeq, %1, %2 : vector<4x8xf32>
    %4 = arith.truncf %0 : vector<4x32xf32> to vector<4x32xbf16>
    %c0_3 = arith.constant 0 : index
    %c0_4 = arith.constant 0 : index
    %5 = vector.load %arg6[%c0_3, %c0_4] : memref<32x32xbf16, #tpu.memory_space<vmem>>, vector<32x32xbf16>
    %cst_5 = arith.constant dense<0.000000e+00> : vector<4x32xf32>
    %6 = tpu.matmul %4, %5, %cst_5 {dimension_numbers = #tpu.dot_dimension_numbers<[1], [0], [0], [1], [0, 0, 1, 1], [], []>} : vector<4x32xbf16>, vector<32x32xbf16>, vector<4x32xf32> -> vector<4x32xf32>
    %c0_6 = arith.constant 0 : index
    %c0_7 = arith.constant 0 : index
    %7 = vector.load %arg2[%c0_6, %c0_7] : memref<32x24xbf16, #tpu.memory_space<vmem>>, vector<32x24xbf16>
    %8 = arith.extf %7 : vector<32x24xbf16> to vector<32x24xf32>
    %c0_8 = arith.constant 0 : index
    %c0_9 = arith.constant 0 : index
    %9 = vector.load %arg3[%c0_8, %c0_9] : memref<32x16xbf16, #tpu.memory_space<vmem>>, vector<32x16xbf16>
    %10 = arith.extf %9 : vector<32x16xbf16> to vector<32x16xf32>
    %c0_10 = arith.constant 0 : index
    %c0_11 = arith.constant 0 : index
    %11 = vector.load %arg4[%c0_10, %c0_11] : memref<32x8xbf16, #tpu.memory_space<vmem>>, vector<32x8xbf16>
    %12 = arith.extf %11 : vector<32x8xbf16> to vector<32x8xf32>
    %13 = tpu.concatenate %8, %10, %12 in 1 : vector<32x24xf32>, vector<32x16xf32>, vector<32x8xf32> -> vector<32x48xf32>
    %14 = arith.truncf %13 : vector<32x48xf32> to vector<32x48xbf16>
    %c0_12 = arith.constant 0 : index
    %c0_13 = arith.constant 0 : index
    %15 = vector.load %arg7[%c0_12, %c0_13] : memref<48x64xbf16, #tpu.memory_space<vmem>>, vector<48x64xbf16>
    %cst_14 = arith.constant dense<0.000000e+00> : vector<32x64xf32>
    %16 = tpu.matmul %14, %15, %cst_14 {dimension_numbers = #tpu.dot_dimension_numbers<[1], [0], [0], [1], [0, 0, 1, 1], [], []>} : vector<32x48xbf16>, vector<48x64xbf16>, vector<32x64xf32> -> vector<32x64xf32>
    %17 = vector.extract_strided_slice %16 {offsets = [0, 0], sizes = [32, 32], strides = [1, 1]} : vector<32x64xf32> to vector<32x32xf32>
    %18 = vector.shape_cast %17 : vector<32x32xf32> to vector<4x8x32xf32>
    %19 = vector.extract_strided_slice %16 {offsets = [0, 32], sizes = [32, 32], strides = [1, 1]} : vector<32x64xf32> to vector<32x32xf32>
    %20 = vector.shape_cast %19 : vector<32x32xf32> to vector<4x8x32xf32>
    %21 = vector.extract_strided_slice %6 {offsets = [0, 0], sizes = [4, 16], strides = [1, 1]} : vector<4x32xf32> to vector<4x16xf32>
    %22 = vector.shape_cast %21 : vector<4x16xf32> to vector<4x1x16xf32>
    %23 = vector.extract_strided_slice %18 {offsets = [0, 0, 0], sizes = [4, 8, 16], strides = [1, 1, 1]} : vector<4x8x32xf32> to vector<4x8x16xf32>
    %24 = vector.broadcast %22 : vector<4x1x16xf32> to vector<4x8x16xf32>
    %25 = arith.mulf %24, %23 : vector<4x8x16xf32>
    %cst_15 = arith.constant dense<0.000000e+00> : vector<4x8xf32>
    %26 = vector.multi_reduction <add>, %25, %cst_15 [2] : vector<4x8x16xf32> to vector<4x8xf32>
    %cst_16 = arith.constant 2.500000e-01 : f32
    %27 = vector.broadcast %cst_16 : f32 to vector<4x8xf32>
    %28 = arith.mulf %26, %27 : vector<4x8xf32>
    %cst_17 = arith.constant -1.000000e+10 : f32
    %29 = vector.broadcast %cst_17 : f32 to vector<4x8xf32>
    %30 = arith.select %3, %29, %28 : vector<4x8xi1>, vector<4x8xf32>
    %cst_18 = arith.constant dense<0xFF800000> : vector<4xf32>
    %31 = vector.multi_reduction <maximumf>, %30, %cst_18 [1] : vector<4x8xf32> to vector<4xf32>
    %32 = vector.shape_cast %31 : vector<4xf32> to vector<4x1xf32>
    %33 = vector.broadcast %32 : vector<4x1xf32> to vector<4x8xf32>
    %34 = arith.subf %30, %33 : vector<4x8xf32>
    %35 = math.exp %34 : vector<4x8xf32>
    %cst_19 = arith.constant dense<0.000000e+00> : vector<4xf32>
    %36 = vector.multi_reduction <add>, %35, %cst_19 [1] : vector<4x8xf32> to vector<4xf32>
    %37 = vector.shape_cast %36 : vector<4xf32> to vector<4x1xf32>
    %38 = tpu.reciprocal %37 {approx = true} : vector<4x1xf32> -> vector<4x1xf32>
    %39 = vector.broadcast %38 : vector<4x1xf32> to vector<4x8xf32>
    %40 = arith.mulf %35, %39 : vector<4x8xf32>
    %41 = vector.shape_cast %40 : vector<4x8xf32> to vector<4x8x1xf32>
    %42 = vector.extract_strided_slice %20 {offsets = [0, 0, 0], sizes = [4, 8, 16], strides = [1, 1, 1]} : vector<4x8x32xf32> to vector<4x8x16xf32>
    %43 = vector.broadcast %41 : vector<4x8x1xf32> to vector<4x8x16xf32>
    %44 = arith.mulf %43, %42 : vector<4x8x16xf32>
    %cst_20 = arith.constant dense<0.000000e+00> : vector<4x16xf32>
    %45 = vector.multi_reduction <add>, %44, %cst_20 [1] : vector<4x8x16xf32> to vector<4x16xf32>
    %46 = vector.extract_strided_slice %6 {offsets = [0, 16], sizes = [4, 16], strides = [1, 1]} : vector<4x32xf32> to vector<4x16xf32>
    %47 = vector.shape_cast %46 : vector<4x16xf32> to vector<4x1x16xf32>
    %48 = vector.extract_strided_slice %18 {offsets = [0, 0, 16], sizes = [4, 8, 16], strides = [1, 1, 1]} : vector<4x8x32xf32> to vector<4x8x16xf32>
    %49 = vector.broadcast %47 : vector<4x1x16xf32> to vector<4x8x16xf32>
    %50 = arith.mulf %49, %48 : vector<4x8x16xf32>
    %cst_21 = arith.constant dense<0.000000e+00> : vector<4x8xf32>
    %51 = vector.multi_reduction <add>, %50, %cst_21 [2] : vector<4x8x16xf32> to vector<4x8xf32>
    %cst_22 = arith.constant 2.500000e-01 : f32
    %52 = vector.broadcast %cst_22 : f32 to vector<4x8xf32>
    %53 = arith.mulf %51, %52 : vector<4x8xf32>
    %cst_23 = arith.constant -1.000000e+10 : f32
    %54 = vector.broadcast %cst_23 : f32 to vector<4x8xf32>
    %55 = arith.select %3, %54, %53 : vector<4x8xi1>, vector<4x8xf32>
    %cst_24 = arith.constant dense<0xFF800000> : vector<4xf32>
    %56 = vector.multi_reduction <maximumf>, %55, %cst_24 [1] : vector<4x8xf32> to vector<4xf32>
    %57 = vector.shape_cast %56 : vector<4xf32> to vector<4x1xf32>
    %58 = vector.broadcast %57 : vector<4x1xf32> to vector<4x8xf32>
    %59 = arith.subf %55, %58 : vector<4x8xf32>
    %60 = math.exp %59 : vector<4x8xf32>
    %cst_25 = arith.constant dense<0.000000e+00> : vector<4xf32>
    %61 = vector.multi_reduction <add>, %60, %cst_25 [1] : vector<4x8xf32> to vector<4xf32>
    %62 = vector.shape_cast %61 : vector<4xf32> to vector<4x1xf32>
    %63 = tpu.reciprocal %62 {approx = true} : vector<4x1xf32> -> vector<4x1xf32>
    %64 = vector.broadcast %63 : vector<4x1xf32> to vector<4x8xf32>
    %65 = arith.mulf %60, %64 : vector<4x8xf32>
    %66 = vector.shape_cast %65 : vector<4x8xf32> to vector<4x8x1xf32>
    %67 = vector.extract_strided_slice %20 {offsets = [0, 0, 16], sizes = [4, 8, 16], strides = [1, 1, 1]} : vector<4x8x32xf32> to vector<4x8x16xf32>
    %68 = vector.broadcast %66 : vector<4x8x1xf32> to vector<4x8x16xf32>
    %69 = arith.mulf %68, %67 : vector<4x8x16xf32>
    %cst_26 = arith.constant dense<0.000000e+00> : vector<4x16xf32>
    %70 = vector.multi_reduction <add>, %69, %cst_26 [1] : vector<4x8x16xf32> to vector<4x16xf32>
    %71 = tpu.concatenate %45, %70 in 1 : vector<4x16xf32>, vector<4x16xf32> -> vector<4x32xf32>
    %72 = arith.truncf %71 : vector<4x32xf32> to vector<4x32xbf16>
    %c0_27 = arith.constant 0 : index
    %c0_28 = arith.constant 0 : index
    %73 = vector.load %arg8[%c0_27, %c0_28] : memref<32x32xbf16, #tpu.memory_space<vmem>>, vector<32x32xbf16>
    %cst_29 = arith.constant dense<0.000000e+00> : vector<4x32xf32>
    %74 = tpu.matmul %72, %73, %cst_29 {dimension_numbers = #tpu.dot_dimension_numbers<[1], [0], [0], [1], [0, 0, 1, 1], [], []>} : vector<4x32xbf16>, vector<32x32xbf16>, vector<4x32xf32> -> vector<4x32xf32>
    %c0_30 = arith.constant 0 : index
    %c0_31 = arith.constant 0 : index
    %75 = vector.load %arg9[%c0_30, %c0_31] : memref<1x32xf32, #tpu.memory_space<vmem>>, vector<1x32xf32>
    %76 = vector.broadcast %75 : vector<1x32xf32> to vector<4x32xf32>
    %77 = arith.addf %74, %76 : vector<4x32xf32>
    %78 = arith.addf %77, %0 : vector<4x32xf32>
    %cst_32 = arith.constant dense<0.000000e+00> : vector<4xf32>
    %79 = vector.multi_reduction <add>, %78, %cst_32 [1] : vector<4x32xf32> to vector<4xf32>
    %80 = vector.shape_cast %79 : vector<4xf32> to vector<4x1xf32>
    %cst_33 = arith.constant 3.200000e+01 : f32
    %81 = vector.broadcast %cst_33 : f32 to vector<4x1xf32>
    %82 = arith.divf %80, %81 : vector<4x1xf32>
    %83 = vector.broadcast %82 : vector<4x1xf32> to vector<4x32xf32>
    %84 = arith.subf %78, %83 : vector<4x32xf32>
    %85 = arith.mulf %84, %84 : vector<4x32xf32>
    %cst_34 = arith.constant dense<0.000000e+00> : vector<4xf32>
    %86 = vector.multi_reduction <add>, %85, %cst_34 [1] : vector<4x32xf32> to vector<4xf32>
    %87 = vector.shape_cast %86 : vector<4xf32> to vector<4x1xf32>
    %cst_35 = arith.constant 3.200000e+01 : f32
    %88 = vector.broadcast %cst_35 : f32 to vector<4x1xf32>
    %89 = arith.divf %87, %88 : vector<4x1xf32>
    %90 = vector.broadcast %82 : vector<4x1xf32> to vector<4x32xf32>
    %91 = arith.subf %78, %90 : vector<4x32xf32>
    %cst_36 = arith.constant 9.99999974E-6 : f32
    %92 = vector.broadcast %cst_36 : f32 to vector<4x1xf32>
    %93 = arith.addf %89, %92 : vector<4x1xf32>
    %94 = math.rsqrt %93 : vector<4x1xf32>
    %95 = vector.broadcast %94 : vector<4x1xf32> to vector<4x32xf32>
    %96 = arith.mulf %91, %95 : vector<4x32xf32>
    %c0_37 = arith.constant 0 : index
    %c0_38 = arith.constant 0 : index
    %97 = vector.load %arg10[%c0_37, %c0_38] : memref<1x32xf32, #tpu.memory_space<vmem>>, vector<1x32xf32>
    %98 = vector.broadcast %97 : vector<1x32xf32> to vector<4x32xf32>
    %99 = arith.mulf %96, %98 : vector<4x32xf32>
    %c0_39 = arith.constant 0 : index
    %c0_40 = arith.constant 0 : index
    %100 = vector.load %arg11[%c0_39, %c0_40] : memref<1x32xf32, #tpu.memory_space<vmem>>, vector<1x32xf32>
    %101 = vector.broadcast %100 : vector<1x32xf32> to vector<4x32xf32>
    %102 = arith.addf %99, %101 : vector<4x32xf32>
    %103 = tpu.concatenate %102, %40, %65 in 1 : vector<4x32xf32>, vector<4x8xf32>, vector<4x8xf32> -> vector<4x48xf32>
    %c0_41 = arith.constant 0 : index
    %c0_42 = arith.constant 0 : index
    %104 = vector.load %arg12[%c0_41, %c0_42] : memref<4x48xf32, #tpu.memory_space<vmem>>, vector<4x48xf32>
    tpu.vector_store %arg12[%c0_41, %c0_42], %103 {strides = array<i32>} : memref<4x48xf32, #tpu.memory_space<vmem>>, vector<4x48xf32>,
    return
  }
  func.func @transform_0(%arg0: i32) -> (i32, i32) {
    %c0_i32 = arith.constant 0 : i32
    %c0_i32_0 = arith.constant 0 : i32
    return %arg0, %c0_i32 : i32, i32
  }
  func.func @transform_1(%arg0: i32) -> (i32, i32) {
    %c0_i32 = arith.constant 0 : i32
    %c0_i32_0 = arith.constant 0 : i32
    return %arg0, %c0_i32 : i32, i32
  }
  func.func @transform_2(%arg0: i32) -> (i32, i32) {
    %c0_i32 = arith.constant 0 : i32
    %c0_i32_0 = arith.constant 0 : i32
    return %arg0, %c0_i32 : i32, i32
  }
  func.func @transform_3(%arg0: i32) -> (i32, i32) {
    %c0_i32 = arith.constant 0 : i32
    %c0_i32_0 = arith.constant 0 : i32
    return %arg0, %c0_i32 : i32, i32
  }
  func.func @transform_4(%arg0: i32) -> (i32, i32) {
    %c0_i32 = arith.constant 0 : i32
    %c0_i32_0 = arith.constant 0 : i32
    return %arg0, %c0_i32 : i32, i32
  }
  func.func @transform_5(%arg0: i32) -> (i32, i32) {
    %c0_i32 = arith.constant 0 : i32
    %c0_i32_0 = arith.constant 0 : i32
    %c0_i32_1 = arith.constant 0 : i32
    return %c0_i32, %c0_i32_0 : i32, i32
  }
  func.func @transform_6(%arg0: i32) -> (i32, i32) {
    %c0_i32 = arith.constant 0 : i32
    %c0_i32_0 = arith.constant 0 : i32
    %c0_i32_1 = arith.constant 0 : i32
    return %c0_i32, %c0_i32_0 : i32, i32
  }
  func.func @transform_7(%arg0: i32) -> (i32, i32) {
    %c0_i32 = arith.constant 0 : i32
    %c0_i32_0 = arith.constant 0 : i32
    %c0_i32_1 = arith.constant 0 : i32
    return %c0_i32, %c0_i32_0 : i32, i32
  }
  func.func @transform_8(%arg0: i32) -> (i32, i32) {
    %c0_i32 = arith.constant 0 : i32
    %c0_i32_0 = arith.constant 0 : i32
    %c0_i32_1 = arith.constant 0 : i32
    return %c0_i32, %c0_i32_0 : i32, i32
  }
  func.func @transform_9(%arg0: i32) -> (i32, i32) {
    %c0_i32 = arith.constant 0 : i32
    %c0_i32_0 = arith.constant 0 : i32
    %c0_i32_1 = arith.constant 0 : i32
    return %c0_i32, %c0_i32_0 : i32, i32
  }
  func.func @transform_10(%arg0: i32) -> (i32, i32) {
    %c0_i32 = arith.constant 0 : i32
    %c0_i32_0 = arith.constant 0 : i32
    %c0_i32_1 = arith.constant 0 : i32
    return %c0_i32, %c0_i32_0 : i32, i32
  }
  func.func @transform_11(%arg0: i32) -> (i32, i32) {
    %c0_i32 = arith.constant 0 : i32
    %c0_i32_0 = arith.constant 0 : i32
    return %arg0, %c0_i32 : i32, i32
  }
}

</mosaic_0001>

<llo_original>
// kernel: tpu_custom_call.1
$region0: #{tpu_custom_call.1}
  #allocation0 [shape = 'u32[]', space=smem, size = 0x4, offset = 0x4, fixed_abs, tag = 'smem constant byte address 0x4 - core index']
  #allocation1 [shape = 'u32[144,128]{1,0:T(1,128)}', space=vmem, size = 0x12000, scoped, tag = 'internal scratch']
  %s0 = inlined_call_operand.vmem [shape: f32[4,32], index: 0, kind: input, shape index: {}]
  %s1 = inlined_call_operand.vmem [shape: bf16[32,24], index: 1, kind: input, shape index: {}]
  %s2 = inlined_call_operand.vmem [shape: bf16[32,16], index: 2, kind: input, shape index: {}]
  %s3 = inlined_call_operand.vmem [shape: bf16[32,8], index: 3, kind: input, shape index: {}]
  %s4 = inlined_call_operand.vmem [shape: f32[4,8], index: 4, kind: input, shape index: {}]
  %s5 = inlined_call_operand.vmem [shape: bf16[32,32], index: 5, kind: input, shape index: {}]
  %s6 = inlined_call_operand.vmem [shape: bf16[48,64], index: 6, kind: input, shape index: {}]
  %s7 = inlined_call_operand.vmem [shape: bf16[32,32], index: 7, kind: input, shape index: {}]
  %s8 = inlined_call_operand.vmem [shape: f32[1,32], index: 8, kind: input, shape index: {}]
  %s9 = inlined_call_operand.vmem [shape: f32[1,32], index: 9, kind: input, shape index: {}]
  %s10 = inlined_call_operand.vmem [shape: f32[1,32], index: 10, kind: input, shape index: {}]
  %s11 = inlined_call_operand.hbm [shape: f32[4,48], index: 11, kind: output, shape index: {}]
  %s12 = sld [smem:[#allocation0]]
  $region54: #{tpu_custom_call.1} parent=0
    _
  %s14 = ssub.s32 1, %s12
  %s15 = scalar_select 0, %s14, %s12
  $region1: #{tpu_custom_call.1} parent=0
    #allocation2 [shape = 'u8[2048]{0}', space=vmem, size = 0x800, scoped, tag = 'output window, operand 0, single buffered']
    #allocation3 [shape = 's32[1]{0}', space=sflag, size = 0x4, scoped, tag = 'scoped memory for tpu_custom_call.1']
    %16 = vsyncpa [#allocation3], 0
    // Predicated region
    $region2: #{tpu_custom_call.1} parent=1 // pred_check
      _
    $region3: #{tpu_custom_call.1} parent=1 // pred_check_branch
      %18 = sbr.rel (0) target = $region5
    $region4: #{tpu_custom_call.1} parent=1 // pred_region
      _
    $region5: #{tpu_custom_call.1} parent=1 // pred_fallthru
      _
    // Predicated region
    $region6: #{tpu_custom_call.1} parent=1 // pred_check
      _
    $region7: #{tpu_custom_call.1} parent=1 // pred_check_branch
      %20 = sbr.rel (0) target = $region9
    $region8: #{tpu_custom_call.1} parent=1 // pred_region
      _
    $region9: #{tpu_custom_call.1} parent=1 // pred_fallthru
      _
    // Predicated region
    $region10: #{tpu_custom_call.1} parent=1 // pred_check
      _
    $region11: #{tpu_custom_call.1} parent=1 // pred_check_branch
      %22 = sbr.rel (0) target = $region13
    $region12: #{tpu_custom_call.1} parent=1 // pred_region
      _
    $region13: #{tpu_custom_call.1} parent=1 // pred_fallthru
      _
    // Predicated region
    $region14: #{tpu_custom_call.1} parent=1 // pred_check
      _
    $region15: #{tpu_custom_call.1} parent=1 // pred_check_branch
      %24 = sbr.rel (0) target = $region17
    $region16: #{tpu_custom_call.1} parent=1 // pred_region
      _
    $region17: #{tpu_custom_call.1} parent=1 // pred_fallthru
      _
    // Predicated region
    $region18: #{tpu_custom_call.1} parent=1 // pred_check
      _
    $region19: #{tpu_custom_call.1} parent=1 // pred_check_branch
      %26 = sbr.rel (0) target = $region21
    $region20: #{tpu_custom_call.1} parent=1 // pred_region
      _
    $region21: #{tpu_custom_call.1} parent=1 // pred_fallthru
      _
    // Predicated region
    $region22: #{tpu_custom_call.1} parent=1 // pred_check
      _
    $region23: #{tpu_custom_call.1} parent=1 // pred_check_branch
      %28 = sbr.rel (0) target = $region25
    $region24: #{tpu_custom_call.1} parent=1 // pred_region
      _
    $region25: #{tpu_custom_call.1} parent=1 // pred_fallthru
      _
    // Predicated region
    $region26: #{tpu_custom_call.1} parent=1 // pred_check
      _
    $region27: #{tpu_custom_call.1} parent=1 // pred_check_branch
      %30 = sbr.rel (0) target = $region29
    $region28: #{tpu_custom_call.1} parent=1 // pred_region
      _
    $region29: #{tpu_custom_call.1} parent=1 // pred_fallthru
      _
    // Predicated region
    $region30: #{tpu_custom_call.1} parent=1 // pred_check
      _
    $region31: #{tpu_custom_call.1} parent=1 // pred_check_branch
      %32 = sbr.rel (0) target = $region33
    $region32: #{tpu_custom_call.1} parent=1 // pred_region
      _
    $region33: #{tpu_custom_call.1} parent=1 // pred_fallthru
      _
    // Predicated region
    $region34: #{tpu_custom_call.1} parent=1 // pred_check
      _
    $region35: #{tpu_custom_call.1} parent=1 // pred_check_branch
      %34 = sbr.rel (0) target = $region37
    $region36: #{tpu_custom_call.1} parent=1 // pred_region
      _
    $region37: #{tpu_custom_call.1} parent=1 // pred_fallthru
      _
    // Predicated region
    $region38: #{tpu_custom_call.1} parent=1 // pred_check
      _
    $region39: #{tpu_custom_call.1} parent=1 // pred_check_branch
      %36 = sbr.rel (0) target = $region41
    $region40: #{tpu_custom_call.1} parent=1 // pred_region
      _
    $region41: #{tpu_custom_call.1} parent=1 // pred_fallthru
      _
    // Predicated region
    $region42: #{tpu_custom_call.1} parent=1 // pred_check
      _
    $region43: #{tpu_custom_call.1} parent=1 // pred_check_branch
      %38 = sbr.rel (0) target = $region45
    $region44: #{tpu_custom_call.1} parent=1 // pred_region
      _
    $region45: #{tpu_custom_call.1} parent=1 // pred_fallthru
      _
    %v40 = vld [vmem:[%s0] sm:$0xf]
    %v41 = vld [vmem:[%s4] sm:$0xf]
    %vm42 = vcmp.eq.f32.partialorder %v41, 0.0
    %v43 = vpack.c.bf16 %v40, %v40
    %v44 = vld [vmem:[%s5] sm:$0xf]
    %v45 = vld [vmem:[%s5 + $0x4] sm:$0xf]
    %v46 = vld [vmem:[%s5 + $0x8] sm:$0xf]
    %v47 = vld [vmem:[%s5 + $0xc] sm:$0xf]
    %v52 = vunpack.c.l.b16 %v44
    %v53 = vunpack.c.l.b16 %v45
    %v54 = vunpack.c.l.b16 %v46
    %v55 = vunpack.c.l.b16 %v47
    %v56 = vpack.c.b16 %v53, %v52
    %v57 = vpack.c.b16 %v55, %v54
    %vm60 = vcmask 261120
    %v62 = vsel %vm60, %v43, 0
    %64 = vmatprep.subr.bf16.mxu0 0
    %65 = vmatpush1.bf16.msra.mxu0 %v56
    %66 = vmatprep.subr.bf16.mxu0 0
    %67 = vmatpush1.bf16.msra.mxu0 %v57
    %68 = vmatprep.subr.bf16.mxu0 0
    %69 = vmatpush1.bf16.msra.mxu0 0
    %70 = vmatprep.subr.bf16.mxu0 0
    %71 = vmatpush1.bf16.msra.mxu0 0
    %72 = vmatprep.subr.bf16.mxu0 0
    %73 = vmatpush1.bf16.msra.mxu0 0
    %74 = vmatprep.subr.bf16.mxu0 0
    %75 = vmatpush1.bf16.msra.mxu0 0
    %76 = vmatprep.subr.bf16.mxu0 0
    %77 = vmatpush1.bf16.msra.mxu0 0
    %78 = vmatprep.subr.bf16.mxu0 0
    %79 = vmatpush1.bf16.msra.mxu0 0
    %80 = vmatprep.subr.bf16.mxu0 0
    %81 = vmatpush1.bf16.msra.mxu0 0
    %82 = vmatprep.subr.bf16.mxu0 0
    %83 = vmatpush1.bf16.msra.mxu0 0
    %84 = vmatprep.subr.bf16.mxu0 0
    %85 = vmatpush1.bf16.msra.mxu0 0
    %86 = vmatprep.subr.bf16.mxu0 0
    %87 = vmatpush1.bf16.msra.mxu0 0
    %88 = vmatprep.subr.bf16.mxu0 0
    %89 = vmatpush1.bf16.msra.mxu0 0
    %90 = vmatprep.subr.bf16.mxu0 0
    %91 = vmatpush1.bf16.msra.mxu0 0
    %92 = vmatprep.subr.bf16.mxu0 0
    %93 = vmatpush1.bf16.msra.mxu0 0
    %94 = vmatprep.subr.bf16.mxu0 0
    %95 = vmatpush1.bf16.msra.mxu0 0
    %96 = vmatprep.mubr.bf16.mxu0 0
    %97 = vmatmul.mubr.bf16.gmra.mrb[0].mxu0 %v62
    %v98 = vpop.f32.mrb[0].mxu0
    %v99 = vadd.f32 0.0, %v98
    %v100 = vpop.f32.mrb[0].mxu0
    %v101 = vpop.f32.mrb[0].mxu0
    %v102 = vpop.f32.mrb[0].mxu0
    %103 = vdwg.mxu0
    %v104 = vld [vmem:[%s1] sm:$0xf]
    %v105 = vld [vmem:[%s1 + $0x4] sm:$0xf]
    %v106 = vld [vmem:[%s1 + $0x8] sm:$0xf]
    %v107 = vld [vmem:[%s1 + $0xc] sm:$0xf]
    %v108 = vunpack.c.l.bf16 %v104
    %v109 = vunpack.c.l.bf16 %v105
    %v110 = vunpack.c.l.bf16 %v106
    %v111 = vunpack.c.l.bf16 %v107
    %v112 = vld [vmem:[%s2] sm:$0xf]
    %v113 = vld [vmem:[%s2 + $0x4] sm:$0xf]
    %v114 = vld [vmem:[%s2 + $0x8] sm:$0xf]
    %v115 = vld [vmem:[%s2 + $0xc] sm:$0xf]
    %v116 = vunpack.c.l.bf16 %v112
    %v117 = vunpack.c.l.bf16 %v113
    %v118 = vunpack.c.l.bf16 %v114
    %v119 = vunpack.c.l.bf16 %v115
    %v120 = vld [vmem:[%s3] sm:$0xf]
    %v121 = vld [vmem:[%s3 + $0x4] sm:$0xf]
    %v122 = vld [vmem:[%s3 + $0x8] sm:$0xf]
    %v123 = vld [vmem:[%s3 + $0xc] sm:$0xf]
    %v124 = vunpack.c.l.bf16 %v120
    %v125 = vunpack.c.l.bf16 %v121
    %v126 = vunpack.c.l.bf16 %v122
    %v127 = vunpack.c.l.bf16 %v123
    %132 = vrot.lane.b32.xlu0 %v116, 24
    %v133 = vpop.permute.xlu0 %132
    %134 = vrot.lane.b32.xlu0 %v117, 24
    %v135 = vpop.permute.xlu0 %134
    %136 = vrot.lane.b32.xlu0 %v118, 24
    %v137 = vpop.permute.xlu0 %136
    %138 = vrot.lane.b32.xlu0 %v119, 24
    %v139 = vpop.permute.xlu0 %138
    %148 = vrot.lane.b32.xlu0 %v124, 40
    %v149 = vpop.permute.xlu0 %148
    %150 = vrot.lane.b32.xlu0 %v125, 40
    %v151 = vpop.permute.xlu0 %150
    %152 = vrot.lane.b32.xlu0 %v126, 40
    %v153 = vpop.permute.xlu0 %152
    %154 = vrot.lane.b32.xlu0 %v127, 40
    %v155 = vpop.permute.xlu0 %154
    %vm160 = vcmask 195584
    %v161 = vsel %vm160, %v108, %v133
    %v162 = vsel %vm160, %v109, %v135
    %v163 = vsel %vm160, %v110, %v137
    %v164 = vsel %vm160, %v111, %v139
    %vm165 = vcmask 326656
    %v166 = vsel %vm165, %v161, %v149
    %v167 = vsel %vm165, %v162, %v151
    %v168 = vsel %vm165, %v163, %v153
    %v169 = vsel %vm165, %v164, %v155
    %v170 = vpack.c.bf16 %v167, %v166
    %v171 = vpack.c.bf16 %v169, %v168
    %v172 = vld [vmem:[%s6] sm:$0xf]
    %v173 = vld [vmem:[%s6 + $0x4] sm:$0xf]
    %v174 = vld [vmem:[%s6 + $0x8] sm:$0xf]
    %v175 = vld [vmem:[%s6 + $0xc] sm:$0xf]
    %v176 = vld [vmem:[%s6 + $0x10] sm:$0xf]
    %v177 = vld [vmem:[%s6 + $0x14] sm:$0xf]
    %v184 = vunpack.c.l.b16 %v172
    %v185 = vunpack.c.l.b16 %v173
    %v186 = vunpack.c.l.b16 %v174
    %v187 = vunpack.c.l.b16 %v175
    %v188 = vunpack.c.l.b16 %v176
    %v189 = vunpack.c.l.b16 %v177
    %v190 = vpack.c.b16 %v185, %v184
    %v191 = vpack.c.b16 %v187, %v186
    %v192 = vpack.c.b16 %v189, %v188
    %vm196 = vcmask 392192
    %v198 = vsel %vm196, %v170, 0
    %v201 = vsel %vm196, %v171, 0
    %203 = vmatprep.subr.bf16.mxu0 0
    %204 = vmatpush1.bf16.msra.mxu0 %v190
    %205 = vmatprep.subr.bf16.mxu0 0
    %206 = vmatpush1.bf16.msra.mxu0 %v191
    %207 = vmatprep.subr.bf16.mxu0 0
    %208 = vmatpush1.bf16.msra.mxu0 %v192
    %209 = vmatprep.subr.bf16.mxu0 0
    %210 = vmatpush1.bf16.msra.mxu0 0
    %211 = vmatprep.subr.bf16.mxu0 0
    %212 = vmatpush1.bf16.msra.mxu0 0
    %213 = vmatprep.subr.bf16.mxu0 0
    %214 = vmatpush1.bf16.msra.mxu0 0
    %215 = vmatprep.subr.bf16.mxu0 0
    %216 = vmatpush1.bf16.msra.mxu0 0
    %217 = vmatprep.subr.bf16.mxu0 0
    %218 = vmatpush1.bf16.msra.mxu0 0
    %219 = vmatprep.subr.bf16.mxu0 0
    %220 = vmatpush1.bf16.msra.mxu0 0
    %221 = vmatprep.subr.bf16.mxu0 0
    %222 = vmatpush1.bf16.msra.mxu0 0
    %223 = vmatprep.subr.bf16.mxu0 0
    %224 = vmatpush1.bf16.msra.mxu0 0
    %225 = vmatprep.subr.bf16.mxu0 0
    %226 = vmatpush1.bf16.msra.mxu0 0
    %227 = vmatprep.subr.bf16.mxu0 0
    %228 = vmatpush1.bf16.msra.mxu0 0
    %229 = vmatprep.subr.bf16.mxu0 0
    %230 = vmatpush1.bf16.msra.mxu0 0
    %231 = vmatprep.subr.bf16.mxu0 0
    %232 = vmatpush1.bf16.msra.mxu0 0
    %233 = vmatprep.subr.bf16.mxu0 0
    %234 = vmatpush1.bf16.msra.mxu0 0
    %235 = vmatprep.mubr.bf16.mxu0 0
    %236 = vmatmul.mubr.bf16.gmra.mrb[0].mxu0 %v198
    %v237 = vpop.f32.mrb[0].mxu0
    %v238 = vadd.f32 0.0, %v237
    %v239 = vpop.f32.mrb[0].mxu0
    %v240 = vpop.f32.mrb[0].mxu0
    %v241 = vadd.f32 0.0, %v240
    %v242 = vpop.f32.mrb[0].mxu0
    %243 = vmatprep.mubr.bf16.mxu0 0
    %244 = vmatmul.mubr.bf16.gmra.mrb[0].mxu0 %v201
    %v245 = vpop.f32.mrb[0].mxu0
    %v246 = vadd.f32 0.0, %v245
    %v247 = vpop.f32.mrb[0].mxu0
    %v248 = vpop.f32.mrb[0].mxu0
    %v249 = vadd.f32 0.0, %v248
    %v250 = vpop.f32.mrb[0].mxu0
    %251 = vdwg.mxu0
    %v254 = vunpack.c.l.s4 1966171168
    %v255 = vunpack.c.0.s8 %v254
    %v256 = vlaneseq
    %v257 = vshrl.u32 %v256, 7
    %v258 = vsub.s32 %v255, %v257
    %v259 = vrot.slane %v99, %v258
    %v260 = vcombine.high %v259, %v259
    %v262 = vunpack.c.l.s4 1966171168
    %v263 = vunpack.c.0.s8 %v262
    %v264 = vlaneseq
    %v265 = vshrl.u32 %v264, 7
    %v266 = vsub.s32 %v263, %v265
    %v267 = vrot.slane %v259, %v266
    %v269 = vunpack.c.l.s4 1966171168
    %v270 = vunpack.c.0.s8 %v269
    %v271 = vlaneseq
    %v272 = vshrl.u32 %v271, 7
    %v273 = vsub.s32 %v270, %v272
    %v274 = vrot.slane %v260, %v273
    %v275 = vcombine.high %v267, %v267
    %v276 = vcombine.high %v274, %v274
    %v277 = vlaneseq
    %v278 = vshrl.u32 %v277, 7
    %v279 = vsub.s32 0, %v278
    %v280 = vrot.slane %v267, %v279
    %v281 = vlaneseq
    %v282 = vshrl.u32 %v281, 7
    %v283 = vsub.s32 0, %v282
    %v284 = vrot.slane %v274, %v283
    %v285 = vlaneseq
    %v286 = vshrl.u32 %v285, 7
    %v287 = vsub.s32 0, %v286
    %v288 = vrot.slane %v275, %v287
    %v289 = vlaneseq
    %v290 = vshrl.u32 %v289, 7
    %v291 = vsub.s32 0, %v290
    %v292 = vrot.slane %v276, %v291
    %v297 = vmul.f32 %v280, %v238
    %v298 = vmul.f32 %v284, %v241
    %v299 = vmul.f32 %v288, %v246
    %v300 = vmul.f32 %v292, %v249
    %vm301 = vcmask 130048
    %v302 = vsel %vm301, %v297, 0.0
    %303 = vadd.xlane.f32.xlu0 %v302
    %v304 = vpop.xlane.xlu0 %303
    %v305 = vsel %vm301, %v298, 0.0
    %306 = vadd.xlane.f32.xlu0 %v305
    %v307 = vpop.xlane.xlu0 %306
    %v308 = vsel %vm301, %v299, 0.0
    %309 = vadd.xlane.f32.xlu0 %v308
    %v310 = vpop.xlane.xlu0 %309
    %v311 = vsel %vm301, %v300, 0.0
    %312 = vadd.xlane.f32.xlu0 %v311
    %v313 = vpop.xlane.xlu0 %312
    %v314 = vmul.f32 %v304, 0.25
    %v315 = vmul.f32 %v307, 0.25
    %v316 = vmul.f32 %v310, 0.25
    %v317 = vmul.f32 %v313, 0.25
    %v322 = vlaneseq
    %v323 = vand.u32 %v322, 127
    %v324 = vlaneseq
    %v325 = vshrl.u32 %v324, 7
    %v326 = vsub.s32 %v323, %v325
    %v327 = vrot.slane %v314, %v326
    %v328 = vlaneseq
    %v329 = vshrl.u32 %v328, 7
    %v330 = vsub.s32 %v323, %v329
    %v331 = vrot.slane %v315, %v330
    %v332 = vlaneseq
    %v333 = vshrl.u32 %v332, 7
    %v334 = vsub.s32 %v323, %v333
    %v335 = vrot.slane %v316, %v334
    %v336 = vlaneseq
    %v337 = vshrl.u32 %v336, 7
    %v338 = vsub.s32 %v323, %v337
    %v339 = vrot.slane %v317, %v338
    %vm340 = vcmask 1041409
    %v341 = vsel %vm340, %v331, %v327
    %vm342 = vcmask 1042434
    %v343 = vsel %vm342, %v335, %v341
    %vm344 = vcmask 1043459
    %v345 = vsel %vm344, %v339, %v343
    %v347 = vsel %vm42, -1e+10, %v345
    %vm348 = vcmask 60416
    %v349 = vsel %vm348, %v347, -inf
    %350 = vmax.xlane.f32.xlu0 %v349
    %v351 = vpop.xlane.xlu0 %350
    %v352 = vsub.f32 %v347, %v351
    %v353 = vmul.f32 %v352, 1.442695
    %v354 = vpow.pop %v353
    %v355 = vsel %vm348, %v354, 0.0
    %356 = vadd.xlane.f32.xlu0 %v355
    %v357 = vpop.xlane.xlu0 %356
    %v358 = vrcp.pop %v357
    %v359 = vmul.f32 %v354, %v358
    %v360 = vlaneseq
    %v361 = vshrl.u32 %v360, 7
    %v362 = vsub.s32 0, %v361
    %v363 = vrot.slane %v359, %v362
    %365 = vbcast.lane.b32.xlu0 %v363, 256
    %v366 = vpop.permute.xlu0 %365
    %v367 = vlaneseq
    %v368 = vshrl.u32 %v367, 7
    %v369 = vsub.s32 1, %v368
    %v370 = vrot.slane %v359, %v369
    %372 = vbcast.lane.b32.xlu0 %v370, 256
    %v373 = vpop.permute.xlu0 %372
    %v374 = vlaneseq
    %v375 = vshrl.u32 %v374, 7
    %v376 = vsub.s32 2, %v375
    %v377 = vrot.slane %v359, %v376
    %379 = vbcast.lane.b32.xlu0 %v377, 256
    %v380 = vpop.permute.xlu0 %379
    %v381 = vlaneseq
    %v382 = vshrl.u32 %v381, 7
    %v383 = vsub.s32 3, %v382
    %v384 = vrot.slane %v359, %v383
    %386 = vbcast.lane.b32.xlu0 %v384, 256
    %v387 = vpop.permute.xlu0 %386
    %v388 = vmul.f32 %v366, %v238
    %v389 = vmul.f32 %v373, %v241
    %v390 = vmul.f32 %v380, %v246
    %v391 = vmul.f32 %v387, %v249
    %vm392 = vcmask 392448
    %v393 = vsel %vm392, %v388, 0.0
    %v394 = vrot.slane %v393, 4
    %v395 = vadd.f32 %v393, %v394
    %v396 = vrot.slane %v395, 2
    %v397 = vadd.f32 %v395, %v396
    %v398 = vrot.slane %v397, 1
    %v399 = vadd.f32 %v397, %v398
    %v400 = vsel %vm392, %v389, 0.0
    %v401 = vrot.slane %v400, 4
    %v402 = vadd.f32 %v400, %v401
    %v403 = vrot.slane %v402, 2
    %v404 = vadd.f32 %v402, %v403
    %v405 = vrot.slane %v404, 1
    %v406 = vadd.f32 %v404, %v405
    %v407 = vsel %vm392, %v390, 0.0
    %v408 = vrot.slane %v407, 4
    %v409 = vadd.f32 %v407, %v408
    %v410 = vrot.slane %v409, 2
    %v411 = vadd.f32 %v409, %v410
    %v412 = vrot.slane %v411, 1
    %v413 = vadd.f32 %v411, %v412
    %v414 = vsel %vm392, %v391, 0.0
    %v415 = vrot.slane %v414, 4
    %v416 = vadd.f32 %v414, %v415
    %v417 = vrot.slane %v416, 2
    %v418 = vadd.f32 %v416, %v417
    %v419 = vrot.slane %v418, 1
    %v420 = vadd.f32 %v418, %v419
    %425 = vrot.lane.b32.xlu0 %v297, 112
    %v426 = vpop.permute.xlu0 %425
    %427 = vrot.lane.b32.xlu0 %v298, 112
    %v428 = vpop.permute.xlu0 %427
    %429 = vrot.lane.b32.xlu0 %v299, 112
    %v430 = vpop.permute.xlu0 %429
    %431 = vrot.lane.b32.xlu0 %v300, 112
    %v432 = vpop.permute.xlu0 %431
    %v437 = vsel %vm301, %v426, 0.0
    %438 = vadd.xlane.f32.xlu0 %v437
    %v439 = vpop.xlane.xlu0 %438
    %v440 = vsel %vm301, %v428, 0.0
    %441 = vadd.xlane.f32.xlu0 %v440
    %v442 = vpop.xlane.xlu0 %441
    %v443 = vsel %vm301, %v430, 0.0
    %444 = vadd.xlane.f32.xlu0 %v443
    %v445 = vpop.xlane.xlu0 %444
    %v446 = vsel %vm301, %v432, 0.0
    %447 = vadd.xlane.f32.xlu0 %v446
    %v448 = vpop.xlane.xlu0 %447
    %v449 = vmul.f32 %v439, 0.25
    %v450 = vmul.f32 %v442, 0.25
    %v451 = vmul.f32 %v445, 0.25
    %v452 = vmul.f32 %v448, 0.25
    %v457 = vlaneseq
    %v458 = vshrl.u32 %v457, 7
    %v459 = vsub.s32 %v323, %v458
    %v460 = vrot.slane %v449, %v459
    %v461 = vlaneseq
    %v462 = vshrl.u32 %v461, 7
    %v463 = vsub.s32 %v323, %v462
    %v464 = vrot.slane %v450, %v463
    %v465 = vlaneseq
    %v466 = vshrl.u32 %v465, 7
    %v467 = vsub.s32 %v323, %v466
    %v468 = vrot.slane %v451, %v467
    %v469 = vlaneseq
    %v470 = vshrl.u32 %v469, 7
    %v471 = vsub.s32 %v323, %v470
    %v472 = vrot.slane %v452, %v471
    %v473 = vsel %vm340, %v464, %v460
    %v474 = vsel %vm342, %v468, %v473
    %v475 = vsel %vm344, %v472, %v474
    %v477 = vsel %vm42, -1e+10, %v475
    %v478 = vsel %vm348, %v477, -inf
    %479 = vmax.xlane.f32.xlu0 %v478
    %v480 = vpop.xlane.xlu0 %479
    %v481 = vsub.f32 %v477, %v480
    %v482 = vmul.f32 %v481, 1.442695
    %v483 = vpow.pop %v482
    %v484 = vsel %vm348, %v483, 0.0
    %485 = vadd.xlane.f32.xlu0 %v484
    %v486 = vpop.xlane.xlu0 %485
    %v487 = vrcp.pop %v486
    %v488 = vmul.f32 %v483, %v487
    %v489 = vlaneseq
    %v490 = vshrl.u32 %v489, 7
    %v491 = vsub.s32 0, %v490
    %v492 = vrot.slane %v488, %v491
    %494 = vbcast.lane.b32.xlu0 %v492, 256
    %v495 = vpop.permute.xlu0 %494
    %v496 = vlaneseq
    %v497 = vshrl.u32 %v496, 7
    %v498 = vsub.s32 1, %v497
    %v499 = vrot.slane %v488, %v498
    %501 = vbcast.lane.b32.xlu0 %v499, 256
    %v502 = vpop.permute.xlu0 %501
    %v503 = vlaneseq
    %v504 = vshrl.u32 %v503, 7
    %v505 = vsub.s32 2, %v504
    %v506 = vrot.slane %v488, %v505
    %508 = vbcast.lane.b32.xlu0 %v506, 256
    %v509 = vpop.permute.xlu0 %508
    %v510 = vlaneseq
    %v511 = vshrl.u32 %v510, 7
    %v512 = vsub.s32 3, %v511
    %v513 = vrot.slane %v488, %v512
    %515 = vbcast.lane.b32.xlu0 %v513, 256
    %v516 = vpop.permute.xlu0 %515
    %v517 = vmul.f32 %v495, %v238
    %v518 = vmul.f32 %v502, %v241
    %v519 = vmul.f32 %v509, %v246
    %v520 = vmul.f32 %v516, %v249
    %vm521 = vcmask 523648
    %v522 = vsel %vm521, %v517, 0.0
    %v523 = vrot.slane %v522, 4
    %v524 = vadd.f32 %v522, %v523
    %v525 = vrot.slane %v524, 2
    %v526 = vadd.f32 %v524, %v525
    %v527 = vrot.slane %v526, 1
    %v528 = vadd.f32 %v526, %v527
    %v529 = vsel %vm521, %v518, 0.0
    %v530 = vrot.slane %v529, 4
    %v531 = vadd.f32 %v529, %v530
    %v532 = vrot.slane %v531, 2
    %v533 = vadd.f32 %v531, %v532
    %v534 = vrot.slane %v533, 1
    %v535 = vadd.f32 %v533, %v534
    %v536 = vsel %vm521, %v519, 0.0
    %v537 = vrot.slane %v536, 4
    %v538 = vadd.f32 %v536, %v537
    %v539 = vrot.slane %v538, 2
    %v540 = vadd.f32 %v538, %v539
    %v541 = vrot.slane %v540, 1
    %v542 = vadd.f32 %v540, %v541
    %v543 = vsel %vm521, %v520, 0.0
    %v544 = vrot.slane %v543, 4
    %v545 = vadd.f32 %v543, %v544
    %v546 = vrot.slane %v545, 2
    %v547 = vadd.f32 %v545, %v546
    %v548 = vrot.slane %v547, 1
    %v549 = vadd.f32 %v547, %v548
    %v554 = vsel %vm340, %v406, %v399
    %v555 = vsel %vm342, %v413, %v554
    %v556 = vsel %vm344, %v420, %v555
    %557 = vrot.lane.b32.xlu0 %v556, 96
    %v558 = vpop.permute.xlu0 %557
    %v564 = vsel %vm340, %v535, %v528
    %v565 = vsel %vm342, %v542, %v564
    %v566 = vsel %vm344, %v549, %v565
    %567 = vrot.lane.b32.xlu0 %v566, 96
    %v568 = vpop.permute.xlu0 %567
    %v570 = vsel %vm301, %v558, %v568
    %v571 = vpack.c.bf16 %v570, %v570
    %v572 = vld [vmem:[%s7] sm:$0xf]
    %v573 = vld [vmem:[%s7 + $0x4] sm:$0xf]
    %v574 = vld [vmem:[%s7 + $0x8] sm:$0xf]
    %v575 = vld [vmem:[%s7 + $0xc] sm:$0xf]
    %v576 = vld [vmem:[%s8] sm:$0x1]
    %v578 = vlaneseq
    %v579 = vshrl.u32 %v578, 7
    %v580 = vsub.s32 0, %v579
    %v581 = vrot.slane %v576, %v580
    %v587 = vunpack.c.l.b16 %v572
    %v588 = vunpack.c.l.b16 %v573
    %v589 = vunpack.c.l.b16 %v574
    %v590 = vunpack.c.l.b16 %v575
    %v591 = vpack.c.b16 %v588, %v587
    %v592 = vpack.c.b16 %v590, %v589
    %v596 = vsel %vm60, %v571, 0
    %598 = vmatprep.subr.bf16.mxu0 0
    %599 = vmatpush1.bf16.msra.mxu0 %v591
    %600 = vmatprep.subr.bf16.mxu0 0
    %601 = vmatpush1.bf16.msra.mxu0 %v592
    %602 = vmatprep.subr.bf16.mxu0 0
    %603 = vmatpush1.bf16.msra.mxu0 0
    %604 = vmatprep.subr.bf16.mxu0 0
    %605 = vmatpush1.bf16.msra.mxu0 0
    %606 = vmatprep.subr.bf16.mxu0 0
    %607 = vmatpush1.bf16.msra.mxu0 0
    %608 = vmatprep.subr.bf16.mxu0 0
    %609 = vmatpush1.bf16.msra.mxu0 0
    %610 = vmatprep.subr.bf16.mxu0 0
    %611 = vmatpush1.bf16.msra.mxu0 0
    %612 = vmatprep.subr.bf16.mxu0 0
    %613 = vmatpush1.bf16.msra.mxu0 0
    %614 = vmatprep.subr.bf16.mxu0 0
    %615 = vmatpush1.bf16.msra.mxu0 0
    %616 = vmatprep.subr.bf16.mxu0 0
    %617 = vmatpush1.bf16.msra.mxu0 0
    %618 = vmatprep.subr.bf16.mxu0 0
    %619 = vmatpush1.bf16.msra.mxu0 0
    %620 = vmatprep.subr.bf16.mxu0 0
    %621 = vmatpush1.bf16.msra.mxu0 0
    %622 = vmatprep.subr.bf16.mxu0 0
    %623 = vmatpush1.bf16.msra.mxu0 0
    %624 = vmatprep.subr.bf16.mxu0 0
    %625 = vmatpush1.bf16.msra.mxu0 0
    %626 = vmatprep.subr.bf16.mxu0 0
    %627 = vmatpush1.bf16.msra.mxu0 0
    %628 = vmatprep.subr.bf16.mxu0 0
    %629 = vmatpush1.bf16.msra.mxu0 0
    %630 = vmatprep.mubr.bf16.mxu0 0
    %631 = vmatmul.mubr.bf16.gmra.mrb[0].mxu0 %v596
    %v632 = vpop.f32.mrb[0].mxu0
    %v633 = vadd.f32 %v581, %v632
    %v634 = vpop.f32.mrb[0].mxu0
    %v635 = vpop.f32.mrb[0].mxu0
    %v636 = vpop.f32.mrb[0].mxu0
    %637 = vdwg.mxu0
    %v638 = vadd.f32 %v633, %v40
    %vm639 = vcmask 257024
    %v640 = vsel %vm639, %v638, 0.0
    %641 = vadd.xlane.f32.xlu0 %v640
    %v642 = vpop.xlane.xlu0 %641
    %v643 = vrcp.pop 32.0
    %v644 = vmul.f32 %v642, %v643
    %v645 = vsub.f32 %v638, %v644
    %v646 = vmul.f32 %v645, %v645
    %v647 = vsel %vm639, %v646, 0.0
    %648 = vadd.xlane.f32.xlu0 %v647
    %v649 = vpop.xlane.xlu0 %648
    %v650 = vmul.f32 %v649, %v643
    %v651 = vadd.f32 %v650, 1e-05
    %v652 = vrsqrt.pop %v651
    %v653 = vmul.f32 %v645, %v652
    %v654 = vld [vmem:[%s9] sm:$0x1]
    %v656 = vlaneseq
    %v657 = vshrl.u32 %v656, 7
    %v658 = vsub.s32 0, %v657
    %v659 = vrot.slane %v654, %v658
    %v661 = vmul.f32 %v653, %v659
    %v662 = vld [vmem:[%s10] sm:$0x1]
    %v664 = vlaneseq
    %v665 = vshrl.u32 %v664, 7
    %v666 = vsub.s32 0, %v665
    %v667 = vrot.slane %v662, %v666
    %v669 = vadd.f32 %v661, %v667
    %671 = vrot.lane.b32.xlu0 %v359, 32
    %v672 = vpop.permute.xlu0 %671
    %675 = vrot.lane.b32.xlu0 %v488, 40
    %v676 = vpop.permute.xlu0 %675
    %v678 = vsel %vm60, %v669, %v672
    %v679 = vsel %vm165, %v678, %v676
    %vm680 = vcmask 388096
    %681 = vst.msk [vmem:[#allocation2] sm:$0xf] %vm680, %v679
    // Predicated region
    $region46: #{tpu_custom_call.1} parent=1 // pred_check
      _
    $region47: #{tpu_custom_call.1} parent=1 // pred_check_branch
      %683 = sbr.rel (0) target = $region49
    $region48: #{tpu_custom_call.1} parent=1 // pred_region
      %s685 = ssub.s32 64, 64
      %686 = vsyncadd [#allocation3], %s685
      %s688 = sshll.u32 [#allocation2], 4
      %s689 = int_to_ptr.vmem [resolvable:$true] %s688
      %691 = dma.vmem_to_hbm [thread:$0]  %s689, 64, %s11, [#allocation3]
    $region49: #{tpu_custom_call.1} parent=1 // pred_fallthru
      _
    // Predicated region
    $region50: #{tpu_custom_call.1} parent=1 // pred_check
      _
    $region51: #{tpu_custom_call.1} parent=1 // pred_check_branch
      %693 = sbr.rel (0) target = $region53
    $region52: #{tpu_custom_call.1} parent=1 // pred_region
      %694 = dma.done [#allocation3], 64
    $region53: #{tpu_custom_call.1} parent=1 // pred_fallthru
      _
    %695 = vsyncpa [#allocation3], 1

</llo_original>
